<compile_context>
chip_gen: v7x
topology: tpu7x:2x2x1
jax: 0.10.0
libtpu: 0.0.40
codegen_flags: <defaults>
</compile_context>

<pallas_src>
import functools

import jax
import jax.numpy as jnp
from jax.experimental import pallas as pl
from jax.experimental.pallas import tpu as pltpu


def synonym_kernel(x_ref, w1_ref, b1_ref, w2_ref, b2_ref, o_ref):
    # fc1 + ReLU
    h = jnp.dot(x_ref[...], w1_ref[...], preferred_element_type=jnp.float32)
    h = jnp.maximum(h + b1_ref[...], 0.0)                      # (TB, H) + (1, H)
    # fc2
    logits = jnp.dot(h, w2_ref[...], preferred_element_type=jnp.float32)
    logits = logits + b2_ref[...]                              # (TB, O) + (1, O)
    # Numerically stable softmax over the feature axis (exact division; see header).
    m = jnp.max(logits, axis=1, keepdims=True)
    e = jnp.exp(logits - m)
    denom = jnp.sum(e, axis=1, keepdims=True)
    o_ref[...] = (e / denom).astype(o_ref.dtype)


def _round_up(n, m):
    return ((n + m - 1) // m) * m


@functools.partial(jax.jit, static_argnames=("block_b",))
def synonym_nn_forward(x, w1, b1, w2, b2, *, block_b=None):
    """Fused fc1 -> ReLU -> fc2 -> softmax(dim=1).

    x: (B, I) float32. Weights stored as (in, out), biases as (1, out).
    block_b=None  -> one grid step covering the whole batch (best on 1-TC v5e/v6e).
    block_b=B//2  -> grid=(2,), one tile per TensorCore on v7x.
    """
    B, I = x.shape
    H = w1.shape[1]
    O = w2.shape[1]

    # Batch tiling: default is a single tile (grid=(1,)) -> zero per-step overhead.
    Bp8 = _round_up(B, 8)                                   # sublane multiple
    TB = Bp8 if block_b is None else _round_up(min(block_b, Bp8), 8)
    Bp = _round_up(Bp8, TB)
    xp = x if Bp == B else jnp.zeros((Bp, I), x.dtype).at[:B, :].set(x)

    out_p = pl.pallas_call(
        synonym_kernel,
        out_shape=jax.ShapeDtypeStruct((Bp, O), jnp.float32),
        grid_spec=pltpu.PrefetchScalarGridSpec(
            num_scalar_prefetch=0,
            grid=(Bp // TB,),
            in_specs=[
                pl.BlockSpec((TB, I), lambda i: (i, 0)),    # activations: stream per tile
                pl.BlockSpec((I, H), lambda i: (0, 0)),     # weights/biases: resident
                pl.BlockSpec((1, H), lambda i: (0, 0)),
                pl.BlockSpec((H, O), lambda i: (0, 0)),
                pl.BlockSpec((1, O), lambda i: (0, 0)),
            ],
            out_specs=pl.BlockSpec((TB, O), lambda i: (i, 0)),
        ),
        compiler_params=pltpu.CompilerParams(
            # Batch rows are independent; only matters if grid > 1 (v7x 2-TC split).
            dimension_semantics=("parallel",),
        ),
    )(xp, w1, b1, w2, b2)

    # Strip batch padding (no-op / no slice when B is already a multiple of 8).
    return out_p if Bp == B else out_p[:B]


def init_params(key, input_size, hidden_size, output_size):
    # Deterministic init matching nn.Linear's U(-1/sqrt(fan_in), 1/sqrt(fan_in)) scheme.
    k1, k2, k3, k4 = jax.random.split(key, 4)
    bound1 = 1.0 / jnp.sqrt(input_size)
    bound2 = 1.0 / jnp.sqrt(hidden_size)
    # Stored transposed relative to PyTorch (in, out) so the kernel computes x @ W.
    w1 = jax.random.uniform(k1, (input_size, hidden_size), jnp.float32, -bound1, bound1)
    b1 = jax.random.uniform(k2, (1, hidden_size), jnp.float32, -bound1, bound1)
    w2 = jax.random.uniform(k3, (hidden_size, output_size), jnp.float32, -bound2, bound2)
    b2 = jax.random.uniform(k4, (1, output_size), jnp.float32, -bound2, bound2)
    return w1, b1, w2, b2


if __name__ == "__main__":
    input_size, hidden_size, output_size = 32, 32, 16
    batch = 256   # many rows per call: amortizes pallas_call fixed overhead

    key = jax.random.PRNGKey(0)
    kx, kp = jax.random.split(key)
    x = jax.random.normal(kx, (batch, input_size), jnp.float32)
    w1, b1, w2, b2 = init_params(kp, input_size, hidden_size, output_size)

    out = synonym_nn_forward(x, w1, b1, w2, b2)
    out = jax.block_until_ready(out)

    # Pure-JAX reference check of semantics.
    h_ref = jnp.maximum(x @ w1 + b1, 0.0)
    ref = jax.nn.softmax(h_ref @ w2 + b2, axis=1)
    assert out.shape == (batch, output_size)
    assert jnp.allclose(out, ref, atol=1e-4, rtol=1e-4)
    assert jnp.allclose(jnp.sum(out, axis=1), 1.0, atol=1e-5)

    print("KERNEL_OK")
</pallas_src>

<mosaic_0001>
module attributes {stable_mosaic.version = 11 : i64} {
  func.func @synonym_kernel(%arg0: i32, %arg1: memref<256x32xf32, #tpu.memory_space<vmem>>, %arg2: memref<32x32xf32, #tpu.memory_space<vmem>>, %arg3: memref<1x32xf32, #tpu.memory_space<vmem>>, %arg4: memref<32x16xf32, #tpu.memory_space<vmem>>, %arg5: memref<1x16xf32, #tpu.memory_space<vmem>>, %arg6: memref<256x16xf32, #tpu.memory_space<vmem>>) attributes {dimension_semantics = [#tpu.dimension_semantics<parallel>], iteration_bounds = array<i64: 1>, scalar_prefetch = 0 : i64, scratch_operands = 0 : i64, tpu.core_type = #tpu.core_type<tc>, window_params = [{transform_indices = @transform_0, window_bounds = array<i64: 256, 32>}, {pipeline_mode = #tpu.pipeline_mode<synchronous>, transform_indices = @transform_1, window_bounds = array<i64: 32, 32>}, {pipeline_mode = #tpu.pipeline_mode<synchronous>, transform_indices = @transform_2, window_bounds = array<i64: 1, 32>}, {pipeline_mode = #tpu.pipeline_mode<synchronous>, transform_indices = @transform_3, window_bounds = array<i64: 32, 16>}, {pipeline_mode = #tpu.pipeline_mode<synchronous>, transform_indices = @transform_4, window_bounds = array<i64: 1, 16>}, {transform_indices = @transform_5, window_bounds = array<i64: 256, 16>}]} {
    %c0 = arith.constant 0 : index
    %c0_0 = arith.constant 0 : index
    %0 = vector.load %arg1[%c0, %c0_0] : memref<256x32xf32, #tpu.memory_space<vmem>>, vector<256x32xf32>
    %c0_1 = arith.constant 0 : index
    %c0_2 = arith.constant 0 : index
    %1 = vector.load %arg2[%c0_1, %c0_2] : memref<32x32xf32, #tpu.memory_space<vmem>>, vector<32x32xf32>
    %cst = arith.constant dense<0.000000e+00> : vector<256x32xf32>
    %2 = tpu.matmul %0, %1, %cst {dimension_numbers = #tpu.dot_dimension_numbers<[1], [0], [0], [1], [0, 0, 1, 1], [], []>} : vector<256x32xf32>, vector<32x32xf32>, vector<256x32xf32> -> vector<256x32xf32>
    %c0_3 = arith.constant 0 : index
    %c0_4 = arith.constant 0 : index
    %3 = vector.load %arg3[%c0_3, %c0_4] : memref<1x32xf32, #tpu.memory_space<vmem>>, vector<1x32xf32>
    %4 = vector.broadcast %3 : vector<1x32xf32> to vector<256x32xf32>
    %5 = arith.addf %2, %4 : vector<256x32xf32>
    %cst_5 = arith.constant 0.000000e+00 : f32
    %6 = vector.broadcast %cst_5 : f32 to vector<256x32xf32>
    %7 = arith.maximumf %5, %6 : vector<256x32xf32>
    %c0_6 = arith.constant 0 : index
    %c0_7 = arith.constant 0 : index
    %8 = vector.load %arg4[%c0_6, %c0_7] : memref<32x16xf32, #tpu.memory_space<vmem>>, vector<32x16xf32>
    %cst_8 = arith.constant dense<0.000000e+00> : vector<256x16xf32>
    %9 = tpu.matmul %7, %8, %cst_8 {dimension_numbers = #tpu.dot_dimension_numbers<[1], [0], [0], [1], [0, 0, 1, 1], [], []>} : vector<256x32xf32>, vector<32x16xf32>, vector<256x16xf32> -> vector<256x16xf32>
    %c0_9 = arith.constant 0 : index
    %c0_10 = arith.constant 0 : index
    %10 = vector.load %arg5[%c0_9, %c0_10] : memref<1x16xf32, #tpu.memory_space<vmem>>, vector<1x16xf32>
    %11 = vector.broadcast %10 : vector<1x16xf32> to vector<256x16xf32>
    %12 = arith.addf %9, %11 : vector<256x16xf32>
    %cst_11 = arith.constant dense<0xFF800000> : vector<256xf32>
    %13 = vector.multi_reduction <maximumf>, %12, %cst_11 [1] : vector<256x16xf32> to vector<256xf32>
    %14 = vector.shape_cast %13 : vector<256xf32> to vector<256x1xf32>
    %15 = vector.broadcast %14 : vector<256x1xf32> to vector<256x16xf32>
    %16 = arith.subf %12, %15 : vector<256x16xf32>
    %17 = math.exp %16 : vector<256x16xf32>
    %cst_12 = arith.constant dense<0.000000e+00> : vector<256xf32>
    %18 = vector.multi_reduction <add>, %17, %cst_12 [1] : vector<256x16xf32> to vector<256xf32>
    %19 = vector.shape_cast %18 : vector<256xf32> to vector<256x1xf32>
    %20 = vector.broadcast %19 : vector<256x1xf32> to vector<256x16xf32>
    %21 = arith.divf %17, %20 : vector<256x16xf32>
    %c0_13 = arith.constant 0 : index
    %c0_14 = arith.constant 0 : index
    %22 = vector.load %arg6[%c0_13, %c0_14] : memref<256x16xf32, #tpu.memory_space<vmem>>, vector<256x16xf32>
    tpu.vector_store %arg6[%c0_13, %c0_14], %21 {strides = array<i32>} : memref<256x16xf32, #tpu.memory_space<vmem>>, vector<256x16xf32>,
    return
  }
  func.func @transform_0(%arg0: i32) -> (i32, i32) {
    %c0_i32 = arith.constant 0 : i32
    %c0_i32_0 = arith.constant 0 : i32
    return %arg0, %c0_i32 : i32, i32
  }
  func.func @transform_1(%arg0: i32) -> (i32, i32) {
    %c0_i32 = arith.constant 0 : i32
    %c0_i32_0 = arith.constant 0 : i32
    %c0_i32_1 = arith.constant 0 : i32
    return %c0_i32, %c0_i32_0 : i32, i32
  }
  func.func @transform_2(%arg0: i32) -> (i32, i32) {
    %c0_i32 = arith.constant 0 : i32
    %c0_i32_0 = arith.constant 0 : i32
    %c0_i32_1 = arith.constant 0 : i32
    return %c0_i32, %c0_i32_0 : i32, i32
  }
  func.func @transform_3(%arg0: i32) -> (i32, i32) {
    %c0_i32 = arith.constant 0 : i32
    %c0_i32_0 = arith.constant 0 : i32
    %c0_i32_1 = arith.constant 0 : i32
    return %c0_i32, %c0_i32_0 : i32, i32
  }
  func.func @transform_4(%arg0: i32) -> (i32, i32) {
    %c0_i32 = arith.constant 0 : i32
    %c0_i32_0 = arith.constant 0 : i32
    %c0_i32_1 = arith.constant 0 : i32
    return %c0_i32, %c0_i32_0 : i32, i32
  }
  func.func @transform_5(%arg0: i32) -> (i32, i32) {
    %c0_i32 = arith.constant 0 : i32
    %c0_i32_0 = arith.constant 0 : i32
    return %arg0, %c0_i32 : i32, i32
  }
}

</mosaic_0001>

<llo_original>
// kernel: synonym_nn_forward.1
$region0: #{synonym_nn_forward.1}
  #allocation0 [shape = 'u32[]', space=smem, size = 0x4, offset = 0x4, fixed_abs, tag = 'smem constant byte address 0x4 - core index']
  #allocation1 [shape = 'u32[144,128]{1,0:T(1,128)}', space=vmem, size = 0x12000, scoped, tag = 'internal scratch']
  %s0 = inlined_call_operand.vmem [shape: f32[256,32], index: 0, kind: input, shape index: {}]
  %s1 = inlined_call_operand.vmem [shape: f32[32,32], index: 1, kind: input, shape index: {}]
  %s2 = inlined_call_operand.vmem [shape: f32[1,32], index: 2, kind: input, shape index: {}]
  %s3 = inlined_call_operand.vmem [shape: f32[32,16], index: 3, kind: input, shape index: {}]
  %s4 = inlined_call_operand.vmem [shape: f32[1,16], index: 4, kind: input, shape index: {}]
  %s5 = inlined_call_operand.vmem [shape: f32[256,16], index: 5, kind: output, shape index: {}]
  %s6 = sld [smem:[#allocation0]]
  $region30: #{synonym_nn_forward.1} parent=0
    _
  %s8 = ssub.s32 1, %s6
  %s9 = scalar_select 0, %s8, %s6
  // Predicated region
  $region2: #{synonym_nn_forward.1} parent=0 // pred_check
    _
  $region3: #{synonym_nn_forward.1} parent=0 // pred_check_branch
    %11 = sbr.rel (0) target = $region5
  $region4: #{synonym_nn_forward.1} parent=0 // pred_region
    _
  $region5: #{synonym_nn_forward.1} parent=0 // pred_fallthru
    _
  // Predicated region
  $region6: #{synonym_nn_forward.1} parent=0 // pred_check
    _
  $region7: #{synonym_nn_forward.1} parent=0 // pred_check_branch
    %13 = sbr.rel (0) target = $region9
  $region8: #{synonym_nn_forward.1} parent=0 // pred_region
    _
  $region9: #{synonym_nn_forward.1} parent=0 // pred_fallthru
    _
  // Predicated region
  $region10: #{synonym_nn_forward.1} parent=0 // pred_check
    _
  $region11: #{synonym_nn_forward.1} parent=0 // pred_check_branch
    %15 = sbr.rel (0) target = $region13
  $region12: #{synonym_nn_forward.1} parent=0 // pred_region
    _
  $region13: #{synonym_nn_forward.1} parent=0 // pred_fallthru
    _
  // Predicated region
  $region14: #{synonym_nn_forward.1} parent=0 // pred_check
    _
  $region15: #{synonym_nn_forward.1} parent=0 // pred_check_branch
    %17 = sbr.rel (0) target = $region17
  $region16: #{synonym_nn_forward.1} parent=0 // pred_region
    _
  $region17: #{synonym_nn_forward.1} parent=0 // pred_fallthru
    _
  // Predicated region
  $region18: #{synonym_nn_forward.1} parent=0 // pred_check
    _
  $region19: #{synonym_nn_forward.1} parent=0 // pred_check_branch
    %19 = sbr.rel (0) target = $region21
  $region20: #{synonym_nn_forward.1} parent=0 // pred_region
    _
  $region21: #{synonym_nn_forward.1} parent=0 // pred_fallthru
    _
  %v20 = vld [vmem:[%s0] sm:$0xff]
  %v21 = vld [vmem:[%s0 + $0x8] sm:$0xff]
  %v22 = vld [vmem:[%s0 + $0x10] sm:$0xff]
  %v23 = vld [vmem:[%s0 + $0x18] sm:$0xff]
  %v24 = vld [vmem:[%s0 + $0x20] sm:$0xff]
  %v25 = vld [vmem:[%s0 + $0x28] sm:$0xff]
  %v26 = vld [vmem:[%s0 + $0x30] sm:$0xff]
  %v27 = vld [vmem:[%s0 + $0x38] sm:$0xff]
  %v28 = vld [vmem:[%s0 + $0x40] sm:$0xff]
  %v29 = vld [vmem:[%s0 + $0x48] sm:$0xff]
  %v30 = vld [vmem:[%s0 + $0x50] sm:$0xff]
  %v31 = vld [vmem:[%s0 + $0x58] sm:$0xff]
  %v32 = vld [vmem:[%s0 + $0x60] sm:$0xff]
  %v33 = vld [vmem:[%s0 + $0x68] sm:$0xff]
  %v34 = vld [vmem:[%s0 + $0x70] sm:$0xff]
  %v35 = vld [vmem:[%s0 + $0x78] sm:$0xff]
  %v36 = vld [vmem:[%s0 + $0x80] sm:$0xff]
  %v37 = vld [vmem:[%s0 + $0x88] sm:$0xff]
  %v38 = vld [vmem:[%s0 + $0x90] sm:$0xff]
  %v39 = vld [vmem:[%s0 + $0x98] sm:$0xff]
  %v40 = vld [vmem:[%s0 + $0xa0] sm:$0xff]
  %v41 = vld [vmem:[%s0 + $0xa8] sm:$0xff]
  %v42 = vld [vmem:[%s0 + $0xb0] sm:$0xff]
  %v43 = vld [vmem:[%s0 + $0xb8] sm:$0xff]
  %v44 = vld [vmem:[%s0 + $0xc0] sm:$0xff]
  %v45 = vld [vmem:[%s0 + $0xc8] sm:$0xff]
  %v46 = vld [vmem:[%s0 + $0xd0] sm:$0xff]
  %v47 = vld [vmem:[%s0 + $0xd8] sm:$0xff]
  %v48 = vld [vmem:[%s0 + $0xe0] sm:$0xff]
  %v49 = vld [vmem:[%s0 + $0xe8] sm:$0xff]
  %v50 = vld [vmem:[%s0 + $0xf0] sm:$0xff]
  %v51 = vld [vmem:[%s0 + $0xf8] sm:$0xff]
  %v52 = vld [vmem:[%s1] sm:$0xff]
  %v53 = vld [vmem:[%s1 + $0x8] sm:$0xff]
  %v54 = vld [vmem:[%s1 + $0x10] sm:$0xff]
  %v55 = vld [vmem:[%s1 + $0x18] sm:$0xff]
  %v56 = vld [vmem:[%s2] sm:$0x1]
  %v58 = vlaneseq
  %v59 = vshrl.u32 %v58, 7
  %v60 = vsub.s32 0, %v59
  %v61 = vrot.slane %v56, %v60
  %vm63 = vcmask 261120
  %v65 = vsel %vm63, %v20, 0
  %v68 = vsel %vm63, %v21, 0
  %v71 = vsel %vm63, %v22, 0
  %v74 = vsel %vm63, %v23, 0
  %v77 = vsel %vm63, %v24, 0
  %v80 = vsel %vm63, %v25, 0
  %v83 = vsel %vm63, %v26, 0
  %v86 = vsel %vm63, %v27, 0
  %v89 = vsel %vm63, %v28, 0
  %v92 = vsel %vm63, %v29, 0
  %v95 = vsel %vm63, %v30, 0
  %v98 = vsel %vm63, %v31, 0
  %v101 = vsel %vm63, %v32, 0
  %v104 = vsel %vm63, %v33, 0
  %v107 = vsel %vm63, %v34, 0
  %v110 = vsel %vm63, %v35, 0
  %v113 = vsel %vm63, %v36, 0
  %v116 = vsel %vm63, %v37, 0
  %v119 = vsel %vm63, %v38, 0
  %v122 = vsel %vm63, %v39, 0
  %v125 = vsel %vm63, %v40, 0
  %v128 = vsel %vm63, %v41, 0
  %v131 = vsel %vm63, %v42, 0
  %v134 = vsel %vm63, %v43, 0
  %v137 = vsel %vm63, %v44, 0
  %v140 = vsel %vm63, %v45, 0
  %v143 = vsel %vm63, %v46, 0
  %v146 = vsel %vm63, %v47, 0
  %v149 = vsel %vm63, %v48, 0
  %v152 = vsel %vm63, %v49, 0
  %v155 = vsel %vm63, %v50, 0
  %v158 = vsel %vm63, %v51, 0
  %160 = vmatprep.subr.mxu0 0.0
  %161 = vmatpush1.msra.mxu0 %v52
  %162 = vmatprep.subr.mxu0 0.0
  %163 = vmatpush1.msra.mxu0 %v53
  %164 = vmatprep.subr.mxu0 0.0
  %165 = vmatpush1.msra.mxu0 %v54
  %166 = vmatprep.subr.mxu0 0.0
  %167 = vmatpush1.msra.mxu0 %v55
  %168 = vmatprep.subr.mxu0 0.0
  %169 = vmatpush1.msra.mxu0 0.0
  %170 = vmatprep.subr.mxu0 0.0
  %171 = vmatpush1.msra.mxu0 0.0
  %172 = vmatprep.subr.mxu0 0.0
  %173 = vmatpush1.msra.mxu0 0.0
  %174 = vmatprep.subr.mxu0 0.0
  %175 = vmatpush1.msra.mxu0 0.0
  %176 = vmatprep.subr.mxu0 0.0
  %177 = vmatpush1.msra.mxu0 0.0
  %178 = vmatprep.subr.mxu0 0.0
  %179 = vmatpush1.msra.mxu0 0.0
  %180 = vmatprep.subr.mxu0 0.0
  %181 = vmatpush1.msra.mxu0 0.0
  %182 = vmatprep.subr.mxu0 0.0
  %183 = vmatpush1.msra.mxu0 0.0
  %184 = vmatprep.subr.mxu0 0.0
  %185 = vmatpush1.msra.mxu0 0.0
  %186 = vmatprep.subr.mxu0 0.0
  %187 = vmatpush1.msra.mxu0 0.0
  %188 = vmatprep.subr.mxu0 0.0
  %189 = vmatpush1.msra.mxu0 0.0
  %190 = vmatprep.subr.mxu0 0.0
  %191 = vmatpush1.msra.mxu0 0.0
  %192 = vmatprep.subr.mxu0 0.0
  %193 = vmatpush1.msra.mxu0 0.0
  %194 = vmatprep.subr.mxu0 0.0
  %195 = vmatpush1.msra.mxu0 0.0
  %196 = vmatprep.subr.mxu0 0.0
  %197 = vmatpush1.msra.mxu0 0.0
  %198 = vmatprep.subr.mxu0 0.0
  %199 = vmatpush1.msra.mxu0 0.0
  %200 = vmatprep.subr.mxu0 0.0
  %201 = vmatpush1.msra.mxu0 0.0
  %202 = vmatprep.subr.mxu0 0.0
  %203 = vmatpush1.msra.mxu0 0.0
  %204 = vmatprep.subr.mxu0 0.0
  %205 = vmatpush1.msra.mxu0 0.0
  %206 = vmatprep.subr.mxu0 0.0
  %207 = vmatpush1.msra.mxu0 0.0
  %208 = vmatprep.subr.mxu0 0.0
  %209 = vmatpush1.msra.mxu0 0.0
  %210 = vmatprep.subr.mxu0 0.0
  %211 = vmatpush1.msra.mxu0 0.0
  %212 = vmatprep.subr.mxu0 0.0
  %213 = vmatpush1.msra.mxu0 0.0
  %214 = vmatprep.subr.mxu0 0.0
  %215 = vmatpush1.msra.mxu0 0.0
  %216 = vmatprep.subr.mxu0 0.0
  %217 = vmatpush1.msra.mxu0 0.0
  %218 = vmatprep.subr.mxu0 0.0
  %219 = vmatpush1.msra.mxu0 0.0
  %220 = vmatprep.subr.mxu0 0.0
  %221 = vmatpush1.msra.mxu0 0.0
  %222 = vmatprep.subr.mxu0 0.0
  %223 = vmatpush1.msra.mxu0 0.0
  %224 = vmatprep.mubr.f32.mxu0 0.0
  %225 = vmatmul.mubr.f32.gmra.mrb[0].mxu0 %v65
  %v226 = vpop.f32.mrb[0].mxu0
  %v227 = vadd.f32 %v61, %v226
  %v228 = vpop.f32.mrb[0].mxu0
  %229 = vmatprep.mubr.f32.mxu0 0.0
  %230 = vmatmul.mubr.f32.gmra.mrb[0].mxu0 %v68
  %v231 = vpop.f32.mrb[0].mxu0
  %v232 = vadd.f32 %v61, %v231
  %v233 = vpop.f32.mrb[0].mxu0
  %234 = vmatprep.mubr.f32.mxu0 0.0
  %235 = vmatmul.mubr.f32.gmra.mrb[0].mxu0 %v71
  %v236 = vpop.f32.mrb[0].mxu0
  %v237 = vadd.f32 %v61, %v236
  %v238 = vpop.f32.mrb[0].mxu0
  %239 = vmatprep.mubr.f32.mxu0 0.0
  %240 = vmatmul.mubr.f32.gmra.mrb[0].mxu0 %v74
  %v241 = vpop.f32.mrb[0].mxu0
  %v242 = vadd.f32 %v61, %v241
  %v243 = vpop.f32.mrb[0].mxu0
  %244 = vmatprep.mubr.f32.mxu0 0.0
  %245 = vmatmul.mubr.f32.gmra.mrb[0].mxu0 %v77
  %v246 = vpop.f32.mrb[0].mxu0
  %v247 = vadd.f32 %v61, %v246
  %v248 = vpop.f32.mrb[0].mxu0
  %249 = vmatprep.mubr.f32.mxu0 0.0
  %250 = vmatmul.mubr.f32.gmra.mrb[0].mxu0 %v80
  %v251 = vpop.f32.mrb[0].mxu0
  %v252 = vadd.f32 %v61, %v251
  %v253 = vpop.f32.mrb[0].mxu0
  %254 = vmatprep.mubr.f32.mxu0 0.0
  %255 = vmatmul.mubr.f32.gmra.mrb[0].mxu0 %v83
  %v256 = vpop.f32.mrb[0].mxu0
  %v257 = vadd.f32 %v61, %v256
  %v258 = vpop.f32.mrb[0].mxu0
  %259 = vmatprep.mubr.f32.mxu0 0.0
  %260 = vmatmul.mubr.f32.gmra.mrb[0].mxu0 %v86
  %v261 = vpop.f32.mrb[0].mxu0
  %v262 = vadd.f32 %v61, %v261
  %v263 = vpop.f32.mrb[0].mxu0
  %264 = vmatprep.mubr.f32.mxu0 0.0
  %265 = vmatmul.mubr.f32.gmra.mrb[0].mxu0 %v89
  %v266 = vpop.f32.mrb[0].mxu0
  %v267 = vadd.f32 %v61, %v266
  %v268 = vpop.f32.mrb[0].mxu0
  %269 = vmatprep.mubr.f32.mxu0 0.0
  %270 = vmatmul.mubr.f32.gmra.mrb[0].mxu0 %v92
  %v271 = vpop.f32.mrb[0].mxu0
  %v272 = vadd.f32 %v61, %v271
  %v273 = vpop.f32.mrb[0].mxu0
  %274 = vmatprep.mubr.f32.mxu0 0.0
  %275 = vmatmul.mubr.f32.gmra.mrb[0].mxu0 %v95
  %v276 = vpop.f32.mrb[0].mxu0
  %v277 = vadd.f32 %v61, %v276
  %v278 = vpop.f32.mrb[0].mxu0
  %279 = vmatprep.mubr.f32.mxu0 0.0
  %280 = vmatmul.mubr.f32.gmra.mrb[0].mxu0 %v98
  %v281 = vpop.f32.mrb[0].mxu0
  %v282 = vadd.f32 %v61, %v281
  %v283 = vpop.f32.mrb[0].mxu0
  %284 = vmatprep.mubr.f32.mxu0 0.0
  %285 = vmatmul.mubr.f32.gmra.mrb[0].mxu0 %v101
  %v286 = vpop.f32.mrb[0].mxu0
  %v287 = vadd.f32 %v61, %v286
  %v288 = vpop.f32.mrb[0].mxu0
  %289 = vmatprep.mubr.f32.mxu0 0.0
  %290 = vmatmul.mubr.f32.gmra.mrb[0].mxu0 %v104
  %v291 = vpop.f32.mrb[0].mxu0
  %v292 = vadd.f32 %v61, %v291
  %v293 = vpop.f32.mrb[0].mxu0
  %294 = vmatprep.mubr.f32.mxu0 0.0
  %295 = vmatmul.mubr.f32.gmra.mrb[0].mxu0 %v107
  %v296 = vpop.f32.mrb[0].mxu0
  %v297 = vadd.f32 %v61, %v296
  %v298 = vpop.f32.mrb[0].mxu0
  %299 = vmatprep.mubr.f32.mxu0 0.0
  %300 = vmatmul.mubr.f32.gmra.mrb[0].mxu0 %v110
  %v301 = vpop.f32.mrb[0].mxu0
  %v302 = vadd.f32 %v61, %v301
  %v303 = vpop.f32.mrb[0].mxu0
  %304 = vmatprep.mubr.f32.mxu0 0.0
  %305 = vmatmul.mubr.f32.gmra.mrb[0].mxu0 %v113
  %v306 = vpop.f32.mrb[0].mxu0
  %v307 = vadd.f32 %v61, %v306
  %v308 = vpop.f32.mrb[0].mxu0
  %309 = vmatprep.mubr.f32.mxu0 0.0
  %310 = vmatmul.mubr.f32.gmra.mrb[0].mxu0 %v116
  %v311 = vpop.f32.mrb[0].mxu0
  %v312 = vadd.f32 %v61, %v311
  %v313 = vpop.f32.mrb[0].mxu0
  %314 = vmatprep.mubr.f32.mxu0 0.0
  %315 = vmatmul.mubr.f32.gmra.mrb[0].mxu0 %v119
  %v316 = vpop.f32.mrb[0].mxu0
  %v317 = vadd.f32 %v61, %v316
  %v318 = vpop.f32.mrb[0].mxu0
  %319 = vmatprep.mubr.f32.mxu0 0.0
  %320 = vmatmul.mubr.f32.gmra.mrb[0].mxu0 %v122
  %v321 = vpop.f32.mrb[0].mxu0
  %v322 = vadd.f32 %v61, %v321
  %v323 = vpop.f32.mrb[0].mxu0
  %324 = vmatprep.mubr.f32.mxu0 0.0
  %325 = vmatmul.mubr.f32.gmra.mrb[0].mxu0 %v125
  %v326 = vpop.f32.mrb[0].mxu0
  %v327 = vadd.f32 %v61, %v326
  %v328 = vpop.f32.mrb[0].mxu0
  %329 = vmatprep.mubr.f32.mxu0 0.0
  %330 = vmatmul.mubr.f32.gmra.mrb[0].mxu0 %v128
  %v331 = vpop.f32.mrb[0].mxu0
  %v332 = vadd.f32 %v61, %v331
  %v333 = vpop.f32.mrb[0].mxu0
  %334 = vmatprep.mubr.f32.mxu0 0.0
  %335 = vmatmul.mubr.f32.gmra.mrb[0].mxu0 %v131
  %v336 = vpop.f32.mrb[0].mxu0
  %v337 = vadd.f32 %v61, %v336
  %v338 = vpop.f32.mrb[0].mxu0
  %339 = vmatprep.mubr.f32.mxu0 0.0
  %340 = vmatmul.mubr.f32.gmra.mrb[0].mxu0 %v134
  %v341 = vpop.f32.mrb[0].mxu0
  %v342 = vadd.f32 %v61, %v341
  %v343 = vpop.f32.mrb[0].mxu0
  %344 = vmatprep.mubr.f32.mxu0 0.0
  %345 = vmatmul.mubr.f32.gmra.mrb[0].mxu0 %v137
  %v346 = vpop.f32.mrb[0].mxu0
  %v347 = vadd.f32 %v61, %v346
  %v348 = vpop.f32.mrb[0].mxu0
  %349 = vmatprep.mubr.f32.mxu0 0.0
  %350 = vmatmul.mubr.f32.gmra.mrb[0].mxu0 %v140
  %v351 = vpop.f32.mrb[0].mxu0
  %v352 = vadd.f32 %v61, %v351
  %v353 = vpop.f32.mrb[0].mxu0
  %354 = vmatprep.mubr.f32.mxu0 0.0
  %355 = vmatmul.mubr.f32.gmra.mrb[0].mxu0 %v143
  %v356 = vpop.f32.mrb[0].mxu0
  %v357 = vadd.f32 %v61, %v356
  %v358 = vpop.f32.mrb[0].mxu0
  %359 = vmatprep.mubr.f32.mxu0 0.0
  %360 = vmatmul.mubr.f32.gmra.mrb[0].mxu0 %v146
  %v361 = vpop.f32.mrb[0].mxu0
  %v362 = vadd.f32 %v61, %v361
  %v363 = vpop.f32.mrb[0].mxu0
  %364 = vmatprep.mubr.f32.mxu0 0.0
  %365 = vmatmul.mubr.f32.gmra.mrb[0].mxu0 %v149
  %v366 = vpop.f32.mrb[0].mxu0
  %v367 = vadd.f32 %v61, %v366
  %v368 = vpop.f32.mrb[0].mxu0
  %369 = vmatprep.mubr.f32.mxu0 0.0
  %370 = vmatmul.mubr.f32.gmra.mrb[0].mxu0 %v152
  %v371 = vpop.f32.mrb[0].mxu0
  %v372 = vadd.f32 %v61, %v371
  %v373 = vpop.f32.mrb[0].mxu0
  %374 = vmatprep.mubr.f32.mxu0 0.0
  %375 = vmatmul.mubr.f32.gmra.mrb[0].mxu0 %v155
  %v376 = vpop.f32.mrb[0].mxu0
  %v377 = vadd.f32 %v61, %v376
  %v378 = vpop.f32.mrb[0].mxu0
  %379 = vmatprep.mubr.f32.mxu0 0.0
  %380 = vmatmul.mubr.f32.gmra.mrb[0].mxu0 %v158
  %v381 = vpop.f32.mrb[0].mxu0
  %v382 = vadd.f32 %v61, %v381
  %v383 = vpop.f32.mrb[0].mxu0
  %384 = vdwg.mxu0
  %v385 = vmax.f32 %v227, 0.0
  %v386 = vmax.f32 %v232, 0.0
  %v387 = vmax.f32 %v237, 0.0
  %v388 = vmax.f32 %v242, 0.0
  %v389 = vmax.f32 %v247, 0.0
  %v390 = vmax.f32 %v252, 0.0
  %v391 = vmax.f32 %v257, 0.0
  %v392 = vmax.f32 %v262, 0.0
  %v393 = vmax.f32 %v267, 0.0
  %v394 = vmax.f32 %v272, 0.0
  %v395 = vmax.f32 %v277, 0.0
  %v396 = vmax.f32 %v282, 0.0
  %v397 = vmax.f32 %v287, 0.0
  %v398 = vmax.f32 %v292, 0.0
  %v399 = vmax.f32 %v297, 0.0
  %v400 = vmax.f32 %v302, 0.0
  %v401 = vmax.f32 %v307, 0.0
  %v402 = vmax.f32 %v312, 0.0
  %v403 = vmax.f32 %v317, 0.0
  %v404 = vmax.f32 %v322, 0.0
  %v405 = vmax.f32 %v327, 0.0
  %v406 = vmax.f32 %v332, 0.0
  %v407 = vmax.f32 %v337, 0.0
  %v408 = vmax.f32 %v342, 0.0
  %v409 = vmax.f32 %v347, 0.0
  %v410 = vmax.f32 %v352, 0.0
  %v411 = vmax.f32 %v357, 0.0
  %v412 = vmax.f32 %v362, 0.0
  %v413 = vmax.f32 %v367, 0.0
  %v414 = vmax.f32 %v372, 0.0
  %v415 = vmax.f32 %v377, 0.0
  %v416 = vmax.f32 %v382, 0.0
  %v417 = vld [vmem:[%s3] sm:$0xff]
  %v418 = vld [vmem:[%s3 + $0x8] sm:$0xff]
  %v419 = vld [vmem:[%s3 + $0x10] sm:$0xff]
  %v420 = vld [vmem:[%s3 + $0x18] sm:$0xff]
  %v421 = vld [vmem:[%s4] sm:$0x1]
  %v423 = vlaneseq
  %v424 = vshrl.u32 %v423, 7
  %v425 = vsub.s32 0, %v424
  %v426 = vrot.slane %v421, %v425
  %v429 = vsel %vm63, %v385, 0
  %v432 = vsel %vm63, %v386, 0
  %v435 = vsel %vm63, %v387, 0
  %v438 = vsel %vm63, %v388, 0
  %v441 = vsel %vm63, %v389, 0
  %v444 = vsel %vm63, %v390, 0
  %v447 = vsel %vm63, %v391, 0
  %v450 = vsel %vm63, %v392, 0
  %v453 = vsel %vm63, %v393, 0
  %v456 = vsel %vm63, %v394, 0
  %v459 = vsel %vm63, %v395, 0
  %v462 = vsel %vm63, %v396, 0
  %v465 = vsel %vm63, %v397, 0
  %v468 = vsel %vm63, %v398, 0
  %v471 = vsel %vm63, %v399, 0
  %v474 = vsel %vm63, %v400, 0
  %v477 = vsel %vm63, %v401, 0
  %v480 = vsel %vm63, %v402, 0
  %v483 = vsel %vm63, %v403, 0
  %v486 = vsel %vm63, %v404, 0
  %v489 = vsel %vm63, %v405, 0
  %v492 = vsel %vm63, %v406, 0
  %v495 = vsel %vm63, %v407, 0
  %v498 = vsel %vm63, %v408, 0
  %v501 = vsel %vm63, %v409, 0
  %v504 = vsel %vm63, %v410, 0
  %v507 = vsel %vm63, %v411, 0
  %v510 = vsel %vm63, %v412, 0
  %v513 = vsel %vm63, %v413, 0
  %v516 = vsel %vm63, %v414, 0
  %v519 = vsel %vm63, %v415, 0
  %v522 = vsel %vm63, %v416, 0
  %524 = vmatprep.subr.mxu0 0.0
  %525 = vmatpush1.msra.mxu0 %v417
  %526 = vmatprep.subr.mxu0 0.0
  %527 = vmatpush1.msra.mxu0 %v418
  %528 = vmatprep.subr.mxu0 0.0
  %529 = vmatpush1.msra.mxu0 %v419
  %530 = vmatprep.subr.mxu0 0.0
  %531 = vmatpush1.msra.mxu0 %v420
  %532 = vmatprep.subr.mxu0 0.0
  %533 = vmatpush1.msra.mxu0 0.0
  %534 = vmatprep.subr.mxu0 0.0
  %535 = vmatpush1.msra.mxu0 0.0
  %536 = vmatprep.subr.mxu0 0.0
  %537 = vmatpush1.msra.mxu0 0.0
  %538 = vmatprep.subr.mxu0 0.0
  %539 = vmatpush1.msra.mxu0 0.0
  %540 = vmatprep.subr.mxu0 0.0
  %541 = vmatpush1.msra.mxu0 0.0
  %542 = vmatprep.subr.mxu0 0.0
  %543 = vmatpush1.msra.mxu0 0.0
  %544 = vmatprep.subr.mxu0 0.0
  %545 = vmatpush1.msra.mxu0 0.0
  %546 = vmatprep.subr.mxu0 0.0
  %547 = vmatpush1.msra.mxu0 0.0
  %548 = vmatprep.subr.mxu0 0.0
  %549 = vmatpush1.msra.mxu0 0.0
  %550 = vmatprep.subr.mxu0 0.0
  %551 = vmatpush1.msra.mxu0 0.0
  %552 = vmatprep.subr.mxu0 0.0
  %553 = vmatpush1.msra.mxu0 0.0
  %554 = vmatprep.subr.mxu0 0.0
  %555 = vmatpush1.msra.mxu0 0.0
  %556 = vmatprep.subr.mxu0 0.0
  %557 = vmatpush1.msra.mxu0 0.0
  %558 = vmatprep.subr.mxu0 0.0
  %559 = vmatpush1.msra.mxu0 0.0
  %560 = vmatprep.subr.mxu0 0.0
  %561 = vmatpush1.msra.mxu0 0.0
  %562 = vmatprep.subr.mxu0 0.0
  %563 = vmatpush1.msra.mxu0 0.0
  %564 = vmatprep.subr.mxu0 0.0
  %565 = vmatpush1.msra.mxu0 0.0
  %566 = vmatprep.subr.mxu0 0.0
  %567 = vmatpush1.msra.mxu0 0.0
  %568 = vmatprep.subr.mxu0 0.0
  %569 = vmatpush1.msra.mxu0 0.0
  %570 = vmatprep.subr.mxu0 0.0
  %571 = vmatpush1.msra.mxu0 0.0
  %572 = vmatprep.subr.mxu0 0.0
  %573 = vmatpush1.msra.mxu0 0.0
  %574 = vmatprep.subr.mxu0 0.0
  %575 = vmatpush1.msra.mxu0 0.0
  %576 = vmatprep.subr.mxu0 0.0
  %577 = vmatpush1.msra.mxu0 0.0
  %578 = vmatprep.subr.mxu0 0.0
  %579 = vmatpush1.msra.mxu0 0.0
  %580 = vmatprep.subr.mxu0 0.0
  %581 = vmatpush1.msra.mxu0 0.0
  %582 = vmatprep.subr.mxu0 0.0
  %583 = vmatpush1.msra.mxu0 0.0
  %584 = vmatprep.subr.mxu0 0.0
  %585 = vmatpush1.msra.mxu0 0.0
  %586 = vmatprep.subr.mxu0 0.0
  %587 = vmatpush1.msra.mxu0 0.0
  %588 = vmatprep.mubr.f32.mxu0 0.0
  %589 = vmatmul.mubr.f32.gmra.mrb[0].mxu0 %v429
  %v590 = vpop.f32.mrb[0].mxu0
  %v591 = vadd.f32 %v426, %v590
  %v592 = vpop.f32.mrb[0].mxu0
  %593 = vmatprep.mubr.f32.mxu0 0.0
  %594 = vmatmul.mubr.f32.gmra.mrb[0].mxu0 %v432
  %v595 = vpop.f32.mrb[0].mxu0
  %v596 = vadd.f32 %v426, %v595
  %v597 = vpop.f32.mrb[0].mxu0
  %598 = vmatprep.mubr.f32.mxu0 0.0
  %599 = vmatmul.mubr.f32.gmra.mrb[0].mxu0 %v435
  %v600 = vpop.f32.mrb[0].mxu0
  %v601 = vadd.f32 %v426, %v600
  %v602 = vpop.f32.mrb[0].mxu0
  %603 = vmatprep.mubr.f32.mxu0 0.0
  %604 = vmatmul.mubr.f32.gmra.mrb[0].mxu0 %v438
  %v605 = vpop.f32.mrb[0].mxu0
  %v606 = vadd.f32 %v426, %v605
  %v607 = vpop.f32.mrb[0].mxu0
  %608 = vmatprep.mubr.f32.mxu0 0.0
  %609 = vmatmul.mubr.f32.gmra.mrb[0].mxu0 %v441
  %v610 = vpop.f32.mrb[0].mxu0
  %v611 = vadd.f32 %v426, %v610
  %v612 = vpop.f32.mrb[0].mxu0
  %613 = vmatprep.mubr.f32.mxu0 0.0
  %614 = vmatmul.mubr.f32.gmra.mrb[0].mxu0 %v444
  %v615 = vpop.f32.mrb[0].mxu0
  %v616 = vadd.f32 %v426, %v615
  %v617 = vpop.f32.mrb[0].mxu0
  %618 = vmatprep.mubr.f32.mxu0 0.0
  %619 = vmatmul.mubr.f32.gmra.mrb[0].mxu0 %v447
  %v620 = vpop.f32.mrb[0].mxu0
  %v621 = vadd.f32 %v426, %v620
  %v622 = vpop.f32.mrb[0].mxu0
  %623 = vmatprep.mubr.f32.mxu0 0.0
  %624 = vmatmul.mubr.f32.gmra.mrb[0].mxu0 %v450
  %v625 = vpop.f32.mrb[0].mxu0
  %v626 = vadd.f32 %v426, %v625
  %v627 = vpop.f32.mrb[0].mxu0
  %628 = vmatprep.mubr.f32.mxu0 0.0
  %629 = vmatmul.mubr.f32.gmra.mrb[0].mxu0 %v453
  %v630 = vpop.f32.mrb[0].mxu0
  %v631 = vadd.f32 %v426, %v630
  %v632 = vpop.f32.mrb[0].mxu0
  %633 = vmatprep.mubr.f32.mxu0 0.0
  %634 = vmatmul.mubr.f32.gmra.mrb[0].mxu0 %v456
  %v635 = vpop.f32.mrb[0].mxu0
  %v636 = vadd.f32 %v426, %v635
  %v637 = vpop.f32.mrb[0].mxu0
  %638 = vmatprep.mubr.f32.mxu0 0.0
  %639 = vmatmul.mubr.f32.gmra.mrb[0].mxu0 %v459
  %v640 = vpop.f32.mrb[0].mxu0
  %v641 = vadd.f32 %v426, %v640
  %v642 = vpop.f32.mrb[0].mxu0
  %643 = vmatprep.mubr.f32.mxu0 0.0
  %644 = vmatmul.mubr.f32.gmra.mrb[0].mxu0 %v462
  %v645 = vpop.f32.mrb[0].mxu0
  %v646 = vadd.f32 %v426, %v645
  %v647 = vpop.f32.mrb[0].mxu0
  %648 = vmatprep.mubr.f32.mxu0 0.0
  %649 = vmatmul.mubr.f32.gmra.mrb[0].mxu0 %v465
  %v650 = vpop.f32.mrb[0].mxu0
  %v651 = vadd.f32 %v426, %v650
  %v652 = vpop.f32.mrb[0].mxu0
  %653 = vmatprep.mubr.f32.mxu0 0.0
  %654 = vmatmul.mubr.f32.gmra.mrb[0].mxu0 %v468
  %v655 = vpop.f32.mrb[0].mxu0
  %v656 = vadd.f32 %v426, %v655
  %v657 = vpop.f32.mrb[0].mxu0
  %658 = vmatprep.mubr.f32.mxu0 0.0
  %659 = vmatmul.mubr.f32.gmra.mrb[0].mxu0 %v471
  %v660 = vpop.f32.mrb[0].mxu0
  %v661 = vadd.f32 %v426, %v660
  %v662 = vpop.f32.mrb[0].mxu0
  %663 = vmatprep.mubr.f32.mxu0 0.0
  %664 = vmatmul.mubr.f32.gmra.mrb[0].mxu0 %v474
  %v665 = vpop.f32.mrb[0].mxu0
  %v666 = vadd.f32 %v426, %v665
  %v667 = vpop.f32.mrb[0].mxu0
  %668 = vmatprep.mubr.f32.mxu0 0.0
  %669 = vmatmul.mubr.f32.gmra.mrb[0].mxu0 %v477
  %v670 = vpop.f32.mrb[0].mxu0
  %v671 = vadd.f32 %v426, %v670
  %v672 = vpop.f32.mrb[0].mxu0
  %673 = vmatprep.mubr.f32.mxu0 0.0
  %674 = vmatmul.mubr.f32.gmra.mrb[0].mxu0 %v480
  %v675 = vpop.f32.mrb[0].mxu0
  %v676 = vadd.f32 %v426, %v675
  %v677 = vpop.f32.mrb[0].mxu0
  %678 = vmatprep.mubr.f32.mxu0 0.0
  %679 = vmatmul.mubr.f32.gmra.mrb[0].mxu0 %v483
  %v680 = vpop.f32.mrb[0].mxu0
  %v681 = vadd.f32 %v426, %v680
  %v682 = vpop.f32.mrb[0].mxu0
  %683 = vmatprep.mubr.f32.mxu0 0.0
  %684 = vmatmul.mubr.f32.gmra.mrb[0].mxu0 %v486
  %v685 = vpop.f32.mrb[0].mxu0
  %v686 = vadd.f32 %v426, %v685
  %v687 = vpop.f32.mrb[0].mxu0
  %688 = vmatprep.mubr.f32.mxu0 0.0
  %689 = vmatmul.mubr.f32.gmra.mrb[0].mxu0 %v489
  %v690 = vpop.f32.mrb[0].mxu0
  %v691 = vadd.f32 %v426, %v690
  %v692 = vpop.f32.mrb[0].mxu0
  %693 = vmatprep.mubr.f32.mxu0 0.0
  %694 = vmatmul.mubr.f32.gmra.mrb[0].mxu0 %v492
  %v695 = vpop.f32.mrb[0].mxu0
  %v696 = vadd.f32 %v426, %v695
  %v697 = vpop.f32.mrb[0].mxu0
  %698 = vmatprep.mubr.f32.mxu0 0.0
  %699 = vmatmul.mubr.f32.gmra.mrb[0].mxu0 %v495
  %v700 = vpop.f32.mrb[0].mxu0
  %v701 = vadd.f32 %v426, %v700
  %v702 = vpop.f32.mrb[0].mxu0
  %703 = vmatprep.mubr.f32.mxu0 0.0
  %704 = vmatmul.mubr.f32.gmra.mrb[0].mxu0 %v498
  %v705 = vpop.f32.mrb[0].mxu0
  %v706 = vadd.f32 %v426, %v705
  %v707 = vpop.f32.mrb[0].mxu0
  %708 = vmatprep.mubr.f32.mxu0 0.0
  %709 = vmatmul.mubr.f32.gmra.mrb[0].mxu0 %v501
  %v710 = vpop.f32.mrb[0].mxu0
  %v711 = vadd.f32 %v426, %v710
  %v712 = vpop.f32.mrb[0].mxu0
  %713 = vmatprep.mubr.f32.mxu0 0.0
  %714 = vmatmul.mubr.f32.gmra.mrb[0].mxu0 %v504
  %v715 = vpop.f32.mrb[0].mxu0
  %v716 = vadd.f32 %v426, %v715
  %v717 = vpop.f32.mrb[0].mxu0
  %718 = vmatprep.mubr.f32.mxu0 0.0
  %719 = vmatmul.mubr.f32.gmra.mrb[0].mxu0 %v507
  %v720 = vpop.f32.mrb[0].mxu0
  %v721 = vadd.f32 %v426, %v720
  %v722 = vpop.f32.mrb[0].mxu0
  %723 = vmatprep.mubr.f32.mxu0 0.0
  %724 = vmatmul.mubr.f32.gmra.mrb[0].mxu0 %v510
  %v725 = vpop.f32.mrb[0].mxu0
  %v726 = vadd.f32 %v426, %v725
  %v727 = vpop.f32.mrb[0].mxu0
  %728 = vmatprep.mubr.f32.mxu0 0.0
  %729 = vmatmul.mubr.f32.gmra.mrb[0].mxu0 %v513
  %v730 = vpop.f32.mrb[0].mxu0
  %v731 = vadd.f32 %v426, %v730
  %v732 = vpop.f32.mrb[0].mxu0
  %733 = vmatprep.mubr.f32.mxu0 0.0
  %734 = vmatmul.mubr.f32.gmra.mrb[0].mxu0 %v516
  %v735 = vpop.f32.mrb[0].mxu0
  %v736 = vadd.f32 %v426, %v735
  %v737 = vpop.f32.mrb[0].mxu0
  %738 = vmatprep.mubr.f32.mxu0 0.0
  %739 = vmatmul.mubr.f32.gmra.mrb[0].mxu0 %v519
  %v740 = vpop.f32.mrb[0].mxu0
  %v741 = vadd.f32 %v426, %v740
  %v742 = vpop.f32.mrb[0].mxu0
  %743 = vmatprep.mubr.f32.mxu0 0.0
  %744 = vmatmul.mubr.f32.gmra.mrb[0].mxu0 %v522
  %v745 = vpop.f32.mrb[0].mxu0
  %v746 = vadd.f32 %v426, %v745
  %v747 = vpop.f32.mrb[0].mxu0
  %748 = vdwg.mxu0
  %vm749 = vcmask 130048
  %v750 = vsel %vm749, %v591, -inf
  %751 = vmax.xlane.f32.xlu0 %v750
  %v752 = vpop.xlane.xlu0 %751
  %v753 = vsel %vm749, %v596, -inf
  %754 = vmax.xlane.f32.xlu0 %v753
  %v755 = vpop.xlane.xlu0 %754
  %v756 = vsel %vm749, %v601, -inf
  %757 = vmax.xlane.f32.xlu0 %v756
  %v758 = vpop.xlane.xlu0 %757
  %v759 = vsel %vm749, %v606, -inf
  %760 = vmax.xlane.f32.xlu0 %v759
  %v761 = vpop.xlane.xlu0 %760
  %v762 = vsel %vm749, %v611, -inf
  %763 = vmax.xlane.f32.xlu0 %v762
  %v764 = vpop.xlane.xlu0 %763
  %v765 = vsel %vm749, %v616, -inf
  %766 = vmax.xlane.f32.xlu0 %v765
  %v767 = vpop.xlane.xlu0 %766
  %v768 = vsel %vm749, %v621, -inf
  %769 = vmax.xlane.f32.xlu0 %v768
  %v770 = vpop.xlane.xlu0 %769
  %v771 = vsel %vm749, %v626, -inf
  %772 = vmax.xlane.f32.xlu0 %v771
  %v773 = vpop.xlane.xlu0 %772
  %v774 = vsel %vm749, %v631, -inf
  %775 = vmax.xlane.f32.xlu0 %v774
  %v776 = vpop.xlane.xlu0 %775
  %v777 = vsel %vm749, %v636, -inf
  %778 = vmax.xlane.f32.xlu0 %v777
  %v779 = vpop.xlane.xlu0 %778
  %v780 = vsel %vm749, %v641, -inf
  %781 = vmax.xlane.f32.xlu0 %v780
  %v782 = vpop.xlane.xlu0 %781
  %v783 = vsel %vm749, %v646, -inf
  %784 = vmax.xlane.f32.xlu0 %v783
  %v785 = vpop.xlane.xlu0 %784
  %v786 = vsel %vm749, %v651, -inf
  %787 = vmax.xlane.f32.xlu0 %v786
  %v788 = vpop.xlane.xlu0 %787
  %v789 = vsel %vm749, %v656, -inf
  %790 = vmax.xlane.f32.xlu0 %v789
  %v791 = vpop.xlane.xlu0 %790
  %v792 = vsel %vm749, %v661, -inf
  %793 = vmax.xlane.f32.xlu0 %v792
  %v794 = vpop.xlane.xlu0 %793
  %v795 = vsel %vm749, %v666, -inf
  %796 = vmax.xlane.f32.xlu0 %v795
  %v797 = vpop.xlane.xlu0 %796
  %v798 = vsel %vm749, %v671, -inf
  %799 = vmax.xlane.f32.xlu0 %v798
  %v800 = vpop.xlane.xlu0 %799
  %v801 = vsel %vm749, %v676, -inf
  %802 = vmax.xlane.f32.xlu0 %v801
  %v803 = vpop.xlane.xlu0 %802
  %v804 = vsel %vm749, %v681, -inf
  %805 = vmax.xlane.f32.xlu0 %v804
  %v806 = vpop.xlane.xlu0 %805
  %v807 = vsel %vm749, %v686, -inf
  %808 = vmax.xlane.f32.xlu0 %v807
  %v809 = vpop.xlane.xlu0 %808
  %v810 = vsel %vm749, %v691, -inf
  %811 = vmax.xlane.f32.xlu0 %v810
  %v812 = vpop.xlane.xlu0 %811
  %v813 = vsel %vm749, %v696, -inf
  %814 = vmax.xlane.f32.xlu0 %v813
  %v815 = vpop.xlane.xlu0 %814
  %v816 = vsel %vm749, %v701, -inf
  %817 = vmax.xlane.f32.xlu0 %v816
  %v818 = vpop.xlane.xlu0 %817
  %v819 = vsel %vm749, %v706, -inf
  %820 = vmax.xlane.f32.xlu0 %v819
  %v821 = vpop.xlane.xlu0 %820
  %v822 = vsel %vm749, %v711, -inf
  %823 = vmax.xlane.f32.xlu0 %v822
  %v824 = vpop.xlane.xlu0 %823
  %v825 = vsel %vm749, %v716, -inf
  %826 = vmax.xlane.f32.xlu0 %v825
  %v827 = vpop.xlane.xlu0 %826
  %v828 = vsel %vm749, %v721, -inf
  %829 = vmax.xlane.f32.xlu0 %v828
  %v830 = vpop.xlane.xlu0 %829
  %v831 = vsel %vm749, %v726, -inf
  %832 = vmax.xlane.f32.xlu0 %v831
  %v833 = vpop.xlane.xlu0 %832
  %v834 = vsel %vm749, %v731, -inf
  %835 = vmax.xlane.f32.xlu0 %v834
  %v836 = vpop.xlane.xlu0 %835
  %v837 = vsel %vm749, %v736, -inf
  %838 = vmax.xlane.f32.xlu0 %v837
  %v839 = vpop.xlane.xlu0 %838
  %v840 = vsel %vm749, %v741, -inf
  %841 = vmax.xlane.f32.xlu0 %v840
  %v842 = vpop.xlane.xlu0 %841
  %v843 = vsel %vm749, %v746, -inf
  %844 = vmax.xlane.f32.xlu0 %v843
  %v845 = vpop.xlane.xlu0 %844
  %v846 = vsub.f32 %v591, %v752
  %v847 = vsub.f32 %v596, %v755
  %v848 = vsub.f32 %v601, %v758
  %v849 = vsub.f32 %v606, %v761
  %v850 = vsub.f32 %v611, %v764
  %v851 = vsub.f32 %v616, %v767
  %v852 = vsub.f32 %v621, %v770
  %v853 = vsub.f32 %v626, %v773
  %v854 = vsub.f32 %v631, %v776
  %v855 = vsub.f32 %v636, %v779
  %v856 = vsub.f32 %v641, %v782
  %v857 = vsub.f32 %v646, %v785
  %v858 = vsub.f32 %v651, %v788
  %v859 = vsub.f32 %v656, %v791
  %v860 = vsub.f32 %v661, %v794
  %v861 = vsub.f32 %v666, %v797
  %v862 = vsub.f32 %v671, %v800
  %v863 = vsub.f32 %v676, %v803
  %v864 = vsub.f32 %v681, %v806
  %v865 = vsub.f32 %v686, %v809
  %v866 = vsub.f32 %v691, %v812
  %v867 = vsub.f32 %v696, %v815
  %v868 = vsub.f32 %v701, %v818
  %v869 = vsub.f32 %v706, %v821
  %v870 = vsub.f32 %v711, %v824
  %v871 = vsub.f32 %v716, %v827
  %v872 = vsub.f32 %v721, %v830
  %v873 = vsub.f32 %v726, %v833
  %v874 = vsub.f32 %v731, %v836
  %v875 = vsub.f32 %v736, %v839
  %v876 = vsub.f32 %v741, %v842
  %v877 = vsub.f32 %v746, %v845
  %v878 = vmul.f32 %v846, 1.442695
  %v879 = vpow.pop %v878
  %v880 = vmul.f32 %v847, 1.442695
  %v881 = vpow.pop %v880
  %v882 = vmul.f32 %v848, 1.442695
  %v883 = vpow.pop %v882
  %v884 = vmul.f32 %v849, 1.442695
  %v885 = vpow.pop %v884
  %v886 = vmul.f32 %v850, 1.442695
  %v887 = vpow.pop %v886
  %v888 = vmul.f32 %v851, 1.442695
  %v889 = vpow.pop %v888
  %v890 = vmul.f32 %v852, 1.442695
  %v891 = vpow.pop %v890
  %v892 = vmul.f32 %v853, 1.442695
  %v893 = vpow.pop %v892
  %v894 = vmul.f32 %v854, 1.442695
  %v895 = vpow.pop %v894
  %v896 = vmul.f32 %v855, 1.442695
  %v897 = vpow.pop %v896
  %v898 = vmul.f32 %v856, 1.442695
  %v899 = vpow.pop %v898
  %v900 = vmul.f32 %v857, 1.442695
  %v901 = vpow.pop %v900
  %v902 = vmul.f32 %v858, 1.442695
  %v903 = vpow.pop %v902
  %v904 = vmul.f32 %v859, 1.442695
  %v905 = vpow.pop %v904
  %v906 = vmul.f32 %v860, 1.442695
  %v907 = vpow.pop %v906
  %v908 = vmul.f32 %v861, 1.442695
  %v909 = vpow.pop %v908
  %v910 = vmul.f32 %v862, 1.442695
  %v911 = vpow.pop %v910
  %v912 = vmul.f32 %v863, 1.442695
  %v913 = vpow.pop %v912
  %v914 = vmul.f32 %v864, 1.442695
  %v915 = vpow.pop %v914
  %v916 = vmul.f32 %v865, 1.442695
  %v917 = vpow.pop %v916
  %v918 = vmul.f32 %v866, 1.442695
  %v919 = vpow.pop %v918
  %v920 = vmul.f32 %v867, 1.442695
  %v921 = vpow.pop %v920
  %v922 = vmul.f32 %v868, 1.442695
  %v923 = vpow.pop %v922
  %v924 = vmul.f32 %v869, 1.442695
  %v925 = vpow.pop %v924
  %v926 = vmul.f32 %v870, 1.442695
  %v927 = vpow.pop %v926
  %v928 = vmul.f32 %v871, 1.442695
  %v929 = vpow.pop %v928
  %v930 = vmul.f32 %v872, 1.442695
  %v931 = vpow.pop %v930
  %v932 = vmul.f32 %v873, 1.442695
  %v933 = vpow.pop %v932
  %v934 = vmul.f32 %v874, 1.442695
  %v935 = vpow.pop %v934
  %v936 = vmul.f32 %v875, 1.442695
  %v937 = vpow.pop %v936
  %v938 = vmul.f32 %v876, 1.442695
  %v939 = vpow.pop %v938
  %v940 = vmul.f32 %v877, 1.442695
  %v941 = vpow.pop %v940
  %v942 = vsel %vm749, %v879, 0.0
  %943 = vadd.xlane.f32.xlu0 %v942
  %v944 = vpop.xlane.xlu0 %943
  %v945 = vsel %vm749, %v881, 0.0
  %946 = vadd.xlane.f32.xlu0 %v945
  %v947 = vpop.xlane.xlu0 %946
  %v948 = vsel %vm749, %v883, 0.0
  %949 = vadd.xlane.f32.xlu0 %v948
  %v950 = vpop.xlane.xlu0 %949
  %v951 = vsel %vm749, %v885, 0.0
  %952 = vadd.xlane.f32.xlu0 %v951
  %v953 = vpop.xlane.xlu0 %952
  %v954 = vsel %vm749, %v887, 0.0
  %955 = vadd.xlane.f32.xlu0 %v954
  %v956 = vpop.xlane.xlu0 %955
  %v957 = vsel %vm749, %v889, 0.0
  %958 = vadd.xlane.f32.xlu0 %v957
  %v959 = vpop.xlane.xlu0 %958
  %v960 = vsel %vm749, %v891, 0.0
  %961 = vadd.xlane.f32.xlu0 %v960
  %v962 = vpop.xlane.xlu0 %961
  %v963 = vsel %vm749, %v893, 0.0
  %964 = vadd.xlane.f32.xlu0 %v963
  %v965 = vpop.xlane.xlu0 %964
  %v966 = vsel %vm749, %v895, 0.0
  %967 = vadd.xlane.f32.xlu0 %v966
  %v968 = vpop.xlane.xlu0 %967
  %v969 = vsel %vm749, %v897, 0.0
  %970 = vadd.xlane.f32.xlu0 %v969
  %v971 = vpop.xlane.xlu0 %970
  %v972 = vsel %vm749, %v899, 0.0
  %973 = vadd.xlane.f32.xlu0 %v972
  %v974 = vpop.xlane.xlu0 %973
  %v975 = vsel %vm749, %v901, 0.0
  %976 = vadd.xlane.f32.xlu0 %v975
  %v977 = vpop.xlane.xlu0 %976
  %v978 = vsel %vm749, %v903, 0.0
  %979 = vadd.xlane.f32.xlu0 %v978
  %v980 = vpop.xlane.xlu0 %979
  %v981 = vsel %vm749, %v905, 0.0
  %982 = vadd.xlane.f32.xlu0 %v981
  %v983 = vpop.xlane.xlu0 %982
  %v984 = vsel %vm749, %v907, 0.0
  %985 = vadd.xlane.f32.xlu0 %v984
  %v986 = vpop.xlane.xlu0 %985
  %v987 = vsel %vm749, %v909, 0.0
  %988 = vadd.xlane.f32.xlu0 %v987
  %v989 = vpop.xlane.xlu0 %988
  %v990 = vsel %vm749, %v911, 0.0
  %991 = vadd.xlane.f32.xlu0 %v990
  %v992 = vpop.xlane.xlu0 %991
  %v993 = vsel %vm749, %v913, 0.0
  %994 = vadd.xlane.f32.xlu0 %v993
  %v995 = vpop.xlane.xlu0 %994
  %v996 = vsel %vm749, %v915, 0.0
  %997 = vadd.xlane.f32.xlu0 %v996
  %v998 = vpop.xlane.xlu0 %997
  %v999 = vsel %vm749, %v917, 0.0
  %1000 = vadd.xlane.f32.xlu0 %v999
  %v1001 = vpop.xlane.xlu0 %1000
  %v1002 = vsel %vm749, %v919, 0.0
  %1003 = vadd.xlane.f32.xlu0 %v1002
  %v1004 = vpop.xlane.xlu0 %1003
  %v1005 = vsel %vm749, %v921, 0.0
  %1006 = vadd.xlane.f32.xlu0 %v1005
  %v1007 = vpop.xlane.xlu0 %1006
  %v1008 = vsel %vm749, %v923, 0.0
  %1009 = vadd.xlane.f32.xlu0 %v1008
  %v1010 = vpop.xlane.xlu0 %1009
  %v1011 = vsel %vm749, %v925, 0.0
  %1012 = vadd.xlane.f32.xlu0 %v1011
  %v1013 = vpop.xlane.xlu0 %1012
  %v1014 = vsel %vm749, %v927, 0.0
  %1015 = vadd.xlane.f32.xlu0 %v1014
  %v1016 = vpop.xlane.xlu0 %1015
  %v1017 = vsel %vm749, %v929, 0.0
  %1018 = vadd.xlane.f32.xlu0 %v1017
  %v1019 = vpop.xlane.xlu0 %1018
  %v1020 = vsel %vm749, %v931, 0.0
  %1021 = vadd.xlane.f32.xlu0 %v1020
  %v1022 = vpop.xlane.xlu0 %1021
  %v1023 = vsel %vm749, %v933, 0.0
  %1024 = vadd.xlane.f32.xlu0 %v1023
  %v1025 = vpop.xlane.xlu0 %1024
  %v1026 = vsel %vm749, %v935, 0.0
  %1027 = vadd.xlane.f32.xlu0 %v1026
  %v1028 = vpop.xlane.xlu0 %1027
  %v1029 = vsel %vm749, %v937, 0.0
  %1030 = vadd.xlane.f32.xlu0 %v1029
  %v1031 = vpop.xlane.xlu0 %1030
  %v1032 = vsel %vm749, %v939, 0.0
  %1033 = vadd.xlane.f32.xlu0 %v1032
  %v1034 = vpop.xlane.xlu0 %1033
  %v1035 = vsel %vm749, %v941, 0.0
  %1036 = vadd.xlane.f32.xlu0 %v1035
  %v1037 = vpop.xlane.xlu0 %1036
  %v1038 = vrcp.pop %v944
  %v1039 = vmul.f32 %v879, %v1038
  %v1040 = vrcp.pop %v947
  %v1041 = vmul.f32 %v881, %v1040
  %v1042 = vrcp.pop %v950
  %v1043 = vmul.f32 %v883, %v1042
  %v1044 = vrcp.pop %v953
  %v1045 = vmul.f32 %v885, %v1044
  %v1046 = vrcp.pop %v956
  %v1047 = vmul.f32 %v887, %v1046
  %v1048 = vrcp.pop %v959
  %v1049 = vmul.f32 %v889, %v1048
  %v1050 = vrcp.pop %v962
  %v1051 = vmul.f32 %v891, %v1050
  %v1052 = vrcp.pop %v965
  %v1053 = vmul.f32 %v893, %v1052
  %v1054 = vrcp.pop %v968
  %v1055 = vmul.f32 %v895, %v1054
  %v1056 = vrcp.pop %v971
  %v1057 = vmul.f32 %v897, %v1056
  %v1058 = vrcp.pop %v974
  %v1059 = vmul.f32 %v899, %v1058
  %v1060 = vrcp.pop %v977
  %v1061 = vmul.f32 %v901, %v1060
  %v1062 = vrcp.pop %v980
  %v1063 = vmul.f32 %v903, %v1062
  %v1064 = vrcp.pop %v983
  %v1065 = vmul.f32 %v905, %v1064
  %v1066 = vrcp.pop %v986
  %v1067 = vmul.f32 %v907, %v1066
  %v1068 = vrcp.pop %v989
  %v1069 = vmul.f32 %v909, %v1068
  %v1070 = vrcp.pop %v992
  %v1071 = vmul.f32 %v911, %v1070
  %v1072 = vrcp.pop %v995
  %v1073 = vmul.f32 %v913, %v1072
  %v1074 = vrcp.pop %v998
  %v1075 = vmul.f32 %v915, %v1074
  %v1076 = vrcp.pop %v1001
  %v1077 = vmul.f32 %v917, %v1076
  %v1078 = vrcp.pop %v1004
  %v1079 = vmul.f32 %v919, %v1078
  %v1080 = vrcp.pop %v1007
  %v1081 = vmul.f32 %v921, %v1080
  %v1082 = vrcp.pop %v1010
  %v1083 = vmul.f32 %v923, %v1082
  %v1084 = vrcp.pop %v1013
  %v1085 = vmul.f32 %v925, %v1084
  %v1086 = vrcp.pop %v1016
  %v1087 = vmul.f32 %v927, %v1086
  %v1088 = vrcp.pop %v1019
  %v1089 = vmul.f32 %v929, %v1088
  %v1090 = vrcp.pop %v1022
  %v1091 = vmul.f32 %v931, %v1090
  %v1092 = vrcp.pop %v1025
  %v1093 = vmul.f32 %v933, %v1092
  %v1094 = vrcp.pop %v1028
  %v1095 = vmul.f32 %v935, %v1094
  %v1096 = vrcp.pop %v1031
  %v1097 = vmul.f32 %v937, %v1096
  %v1098 = vrcp.pop %v1034
  %v1099 = vmul.f32 %v939, %v1098
  %v1100 = vrcp.pop %v1037
  %v1101 = vmul.f32 %v941, %v1100
  %1102 = vst.msk [vmem:[%s5] sm:$0xff] %vm749, %v1039
  %1103 = vst.msk [vmem:[%s5 + $0x8] sm:$0xff] %vm749, %v1041
  %1104 = vst.msk [vmem:[%s5 + $0x10] sm:$0xff] %vm749, %v1043
  %1105 = vst.msk [vmem:[%s5 + $0x18] sm:$0xff] %vm749, %v1045
  %1106 = vst.msk [vmem:[%s5 + $0x20] sm:$0xff] %vm749, %v1047
  %1107 = vst.msk [vmem:[%s5 + $0x28] sm:$0xff] %vm749, %v1049
  %1108 = vst.msk [vmem:[%s5 + $0x30] sm:$0xff] %vm749, %v1051
  %1109 = vst.msk [vmem:[%s5 + $0x38] sm:$0xff] %vm749, %v1053
  %1110 = vst.msk [vmem:[%s5 + $0x40] sm:$0xff] %vm749, %v1055
  %1111 = vst.msk [vmem:[%s5 + $0x48] sm:$0xff] %vm749, %v1057
  %1112 = vst.msk [vmem:[%s5 + $0x50] sm:$0xff] %vm749, %v1059
  %1113 = vst.msk [vmem:[%s5 + $0x58] sm:$0xff] %vm749, %v1061
  %1114 = vst.msk [vmem:[%s5 + $0x60] sm:$0xff] %vm749, %v1063
  %1115 = vst.msk [vmem:[%s5 + $0x68] sm:$0xff] %vm749, %v1065
  %1116 = vst.msk [vmem:[%s5 + $0x70] sm:$0xff] %vm749, %v1067
  %1117 = vst.msk [vmem:[%s5 + $0x78] sm:$0xff] %vm749, %v1069
  %1118 = vst.msk [vmem:[%s5 + $0x80] sm:$0xff] %vm749, %v1071
  %1119 = vst.msk [vmem:[%s5 + $0x88] sm:$0xff] %vm749, %v1073
  %1120 = vst.msk [vmem:[%s5 + $0x90] sm:$0xff] %vm749, %v1075
  %1121 = vst.msk [vmem:[%s5 + $0x98] sm:$0xff] %vm749, %v1077
  %1122 = vst.msk [vmem:[%s5 + $0xa0] sm:$0xff] %vm749, %v1079
  %1123 = vst.msk [vmem:[%s5 + $0xa8] sm:$0xff] %vm749, %v1081
  %1124 = vst.msk [vmem:[%s5 + $0xb0] sm:$0xff] %vm749, %v1083
  %1125 = vst.msk [vmem:[%s5 + $0xb8] sm:$0xff] %vm749, %v1085
  %1126 = vst.msk [vmem:[%s5 + $0xc0] sm:$0xff] %vm749, %v1087
  %1127 = vst.msk [vmem:[%s5 + $0xc8] sm:$0xff] %vm749, %v1089
  %1128 = vst.msk [vmem:[%s5 + $0xd0] sm:$0xff] %vm749, %v1091
  %1129 = vst.msk [vmem:[%s5 + $0xd8] sm:$0xff] %vm749, %v1093
  %1130 = vst.msk [vmem:[%s5 + $0xe0] sm:$0xff] %vm749, %v1095
  %1131 = vst.msk [vmem:[%s5 + $0xe8] sm:$0xff] %vm749, %v1097
  %1132 = vst.msk [vmem:[%s5 + $0xf0] sm:$0xff] %vm749, %v1099
  %1133 = vst.msk [vmem:[%s5 + $0xf8] sm:$0xff] %vm749, %v1101
  // Predicated region
  $region22: #{synonym_nn_forward.1} parent=0 // pred_check
    _
  $region23: #{synonym_nn_forward.1} parent=0 // pred_check_branch
    %1135 = sbr.rel (0) target = $region25
  $region24: #{synonym_nn_forward.1} parent=0 // pred_region
    _
  $region25: #{synonym_nn_forward.1} parent=0 // pred_fallthru
    _
  // Predicated region
  $region26: #{synonym_nn_forward.1} parent=0 // pred_check
    _
  $region27: #{synonym_nn_forward.1} parent=0 // pred_check_branch
    %1137 = sbr.rel (0) target = $region29
  $region28: #{synonym_nn_forward.1} parent=0 // pred_region
    _
  $region29: #{synonym_nn_forward.1} parent=0 // pred_fallthru
    _

</llo_original>
